<compile_context>
chip_gen: v7x
topology: tpu7x:2x2x1
jax: 0.10.0
libtpu: 0.0.40
codegen_flags: <defaults>
</compile_context>

<pallas_src>
import math
from functools import partial
from typing import NamedTuple

import jax
import jax.numpy as jnp
from jax.experimental import pallas as pl
from jax.experimental.pallas import tpu as pltpu


# --------------------------------------------------------------------------
# Planning helpers
# --------------------------------------------------------------------------

def _round_up(x, m):
    return ((x + m - 1) // m) * m


def _vmem_capacity_bytes():
    try:
        return int(pltpu.get_tpu_info().vmem_capacity_bytes)
    except Exception:
        return 64 * 1024 * 1024  # conservative fallback (v7x per-TC VMEM)


def _plan_axis(size, max_tile, align):
    """Pick (tile, num_blocks, padded_size): tile aligned, blocks balanced."""
    padded = _round_up(size, align)
    tile = min(max_tile, padded)
    blocks = pl.cdiv(padded, tile)
    tile = _round_up(pl.cdiv(padded, blocks), align)
    return tile, blocks, tile * blocks


class DensePlan(NamedTuple):
    K: int
    N: int
    Kp: int
    Np: int
    tn: int
    n_blocks: int
    tk: int
    k_blocks: int
    k_resident: bool
    vmem_limit: int


# --------------------------------------------------------------------------
# Kernels
# --------------------------------------------------------------------------

def _dense_relu_kernel_kres(x_ref, w_ref, b_ref, o_ref):
    # x: (tm, Kp) bf16, w: (Kp, tn) bf16, b: (1, tn) f32, o: (tm, tn)
    acc = jnp.dot(x_ref[...], w_ref[...], preferred_element_type=jnp.float32)
    o_ref[...] = jnp.maximum(acc + b_ref[...], 0.0).astype(o_ref.dtype)


def _dense_relu_kernel_ktiled_f32out(x_ref, w_ref, b_ref, o_ref):
    # Output tile is f32 and resident across k -> accumulate in place.
    k = pl.program_id(2)

    @pl.when(k == 0)
    def _():
        o_ref[...] = jnp.zeros_like(o_ref)

    o_ref[...] += jnp.dot(x_ref[...], w_ref[...],
                          preferred_element_type=jnp.float32)

    @pl.when(k == pl.num_programs(2) - 1)
    def _():
        o_ref[...] = jnp.maximum(o_ref[...] + b_ref[...], 0.0)


def _dense_relu_kernel_ktiled_scratch(x_ref, w_ref, b_ref, o_ref, acc_ref):
    # Narrow output dtype: keep an f32 VMEM accumulator, cast in epilogue.
    k = pl.program_id(2)

    @pl.when(k == 0)
    def _():
        acc_ref[...] = jnp.zeros_like(acc_ref)

    acc_ref[...] += jnp.dot(x_ref[...], w_ref[...],
                            preferred_element_type=jnp.float32)

    @pl.when(k == pl.num_programs(2) - 1)
    def _():
        o_ref[...] = jnp.maximum(acc_ref[...] + b_ref[...], 0.0).astype(o_ref.dtype)


# --------------------------------------------------------------------------
# One-time parameter preparation (amortized over all forward calls)
# --------------------------------------------------------------------------

def prepare_dense_params(weight, bias, *, max_tn=512, max_tk=1024,
                         compute_dtype=jnp.bfloat16):
    """Transpose PyTorch [out, in] weight to [K, N], zero-pad K/N to 128
    multiples, cast to bf16 for the MXU. Bias stays f32 (f32 epilogue)."""
    N, K = weight.shape
    cap = _vmem_capacity_bytes()
    budget = min(cap // 2, 48 << 20)          # double-buffered working-set budget
    vmem_limit = min(cap * 3 // 4, 100 << 20)

    tn, n_blocks, Np = _plan_axis(N, max_tn, 128)
    Kp128 = _round_up(K, 128)

    # K-resident fast path if full-K operand blocks (double buffered) fit.
    op_bytes = jnp.dtype(compute_dtype).itemsize
    max_tm = 512
    resident_bytes = (2 * (max_tm * Kp128 + Kp128 * tn) * op_bytes
                      + 2 * max_tm * tn * 4)
    k_resident = resident_bytes <= budget
    if k_resident:
        tk, k_blocks, Kp = Kp128, 1, Kp128
    else:
        tk, k_blocks, Kp = _plan_axis(K, max_tk, 128)

    w_kn = weight.T.astype(compute_dtype)                 # [K, N], once
    w_kn = jnp.pad(w_kn, ((0, Kp - K), (0, Np - N)))
    b2 = jnp.pad(bias.astype(jnp.float32).reshape(1, N), ((0, 0), (0, Np - N)))

    plan = DensePlan(K=K, N=N, Kp=Kp, Np=Np, tn=tn, n_blocks=n_blocks,
                     tk=tk, k_blocks=k_blocks, k_resident=k_resident,
                     vmem_limit=int(vmem_limit))
    return w_kn, b2, plan


# --------------------------------------------------------------------------
# Forward
# --------------------------------------------------------------------------

@partial(jax.jit, static_argnames=("B", "K", "N", "Kp", "Np", "tm", "tn", "tk",
                                   "m_blocks", "n_blocks", "k_blocks",
                                   "k_resident", "vmem_limit", "compute_dtype"))
def _dense_forward_impl(x, w_kn, bias2, *, B, K, N, Kp, Np, tm, tn, tk,
                        m_blocks, n_blocks, k_blocks, k_resident, vmem_limit,
                        compute_dtype):
    out_dtype = x.dtype
    Mp = m_blocks * tm

    xc = x.astype(compute_dtype)
    if (Mp, Kp) != (B, K):
        xc = jnp.pad(xc, ((0, Mp - B), (0, Kp - K)))   # zeros are inert for matmul

    op_bytes = jnp.dtype(compute_dtype).itemsize
    out_bytes = jnp.dtype(out_dtype).itemsize
    cost = pl.CostEstimate(
        flops=2 * Mp * Np * Kp,
        transcendentals=0,
        bytes_accessed=(Mp * Kp * op_bytes * n_blocks      # x read per N block
                        + Kp * Np * op_bytes * m_blocks    # w read per M block
                        + Np * 4                           # bias
                        + Mp * Np * out_bytes),            # output write
    )

    if k_resident:
        grid = (m_blocks, n_blocks)
        in_specs = [
            pl.BlockSpec((tm, Kp), lambda i, j: (i, 0)),   # x
            pl.BlockSpec((Kp, tn), lambda i, j: (0, j)),   # weight [K, N]
            pl.BlockSpec((1, tn), lambda i, j: (0, j)),    # bias
        ]
        out_specs = pl.BlockSpec((tm, tn), lambda i, j: (i, j))
        scratch_shapes = []
        kernel = _dense_relu_kernel_kres
        dims = ("parallel", "parallel")
    else:
        grid = (m_blocks, n_blocks, k_blocks)
        in_specs = [
            pl.BlockSpec((tm, tk), lambda i, j, k: (i, k)),
            pl.BlockSpec((tk, tn), lambda i, j, k: (k, j)),
            pl.BlockSpec((1, tn), lambda i, j, k: (0, j)),
        ]
        out_specs = pl.BlockSpec((tm, tn), lambda i, j, k: (i, j))
        dims = ("parallel", "parallel", "arbitrary")
        if out_dtype == jnp.float32:
            kernel = _dense_relu_kernel_ktiled_f32out
            scratch_shapes = []
        else:
            kernel = _dense_relu_kernel_ktiled_scratch
            scratch_shapes = [pltpu.VMEM((tm, tn), jnp.float32)]

    out = pl.pallas_call(
        kernel,
        out_shape=jax.ShapeDtypeStruct((Mp, Np), out_dtype),
        grid_spec=pltpu.PrefetchScalarGridSpec(
            num_scalar_prefetch=0,
            grid=grid,
            in_specs=in_specs,
            out_specs=out_specs,
            scratch_shapes=scratch_shapes,
        ),
        compiler_params=pltpu.CompilerParams(
            dimension_semantics=dims,
            vmem_limit_bytes=vmem_limit,
        ),
        cost_estimate=cost,
    )(xc, w_kn, bias2)

    if (Mp, Np) != (B, N):
        out = out[:B, :N]
    return out


def dense_forward(x, w_kn, bias2, plan: DensePlan, *, max_tm=512,
                  compute_dtype=jnp.bfloat16):
    """y = relu(x @ W^T + b) with prepared params (see prepare_dense_params)."""
    B, K = x.shape
    assert K == plan.K, "in_features mismatch"

    # bf16 operands pack 2 rows per sublane -> M tiles are multiples of 16.
    tm, m_blocks, _ = _plan_axis(B, max_tm, 16)

    tn, n_blocks = plan.tn, plan.n_blocks
    # v7x has 2 TensorCores: if the grid would collapse to one (M,N) block,
    # split N into 2 blocks when it costs no extra padding (no-op on v5e/v6e).
    if m_blocks * n_blocks == 1 and plan.Np >= 256 and (plan.Np // 2) % 128 == 0:
        tn, n_blocks = plan.Np // 2, 2

    return _dense_forward_impl(
        x, w_kn, bias2,
        B=B, K=plan.K, N=plan.N, Kp=plan.Kp, Np=plan.Np,
        tm=tm, tn=tn, tk=plan.tk,
        m_blocks=m_blocks, n_blocks=n_blocks, k_blocks=plan.k_blocks,
        k_resident=plan.k_resident, vmem_limit=plan.vmem_limit,
        compute_dtype=compute_dtype)


def _reference(x, weight, bias):
    return jnp.maximum(x @ weight.T + bias, 0.0)


if __name__ == "__main__":
    # Small shapes consistent with the module's forward: a batch of feature
    # vectors through Linear(in_features=32, out_features=64) + ReLU.
    batch, in_features, out_features = 8, 32, 64

    key = jax.random.PRNGKey(0)
    kx, kw, kb = jax.random.split(key, 3)

    # PyTorch-style init: U(-1/sqrt(in), 1/sqrt(in))
    bound = 1.0 / math.sqrt(in_features)
    weight = jax.random.uniform(
        kw, (out_features, in_features), jnp.float32, -bound, bound)
    bias = jax.random.uniform(kb, (out_features,), jnp.float32, -bound, bound)
    x = jax.random.normal(kx, (batch, in_features), jnp.float32)

    # One-time parameter prep (transpose to [K, N], pad, cast to bf16).
    w_kn, b2, plan = prepare_dense_params(weight, bias)

    y = dense_forward(x, w_kn, b2, plan)
    y = jax.block_until_ready(y)

    y_ref = _reference(x, weight, bias)
    assert y.shape == (batch, out_features)
    # bf16 operands with f32 accumulation: allow bf16-level tolerance.
    assert jnp.allclose(y, y_ref, atol=2e-2, rtol=2e-2), "mismatch vs reference"

    print("KERNEL_OK")
</pallas_src>

<mosaic_0001>
module attributes {stable_mosaic.version = 11 : i64} {
  func.func @_dense_relu_kernel_kres(%arg0: i32, %arg1: i32, %arg2: memref<16x128xbf16, #tpu.memory_space<vmem>>, %arg3: memref<128x128xbf16, #tpu.memory_space<vmem>>, %arg4: memref<1x128xf32, #tpu.memory_space<vmem>>, %arg5: memref<16x128xf32, #tpu.memory_space<vmem>>) attributes {dimension_semantics = [#tpu.dimension_semantics<parallel>, #tpu.dimension_semantics<parallel>], iteration_bounds = array<i64: 1, 1>, scalar_prefetch = 0 : i64, scratch_operands = 0 : i64, tpu.core_type = #tpu.core_type<tc>, window_params = [{transform_indices = @transform_0, window_bounds = array<i64: 16, 128>}, {transform_indices = @transform_1, window_bounds = array<i64: 128, 128>}, {transform_indices = @transform_2, window_bounds = array<i64: 1, 128>}, {transform_indices = @transform_3, window_bounds = array<i64: 16, 128>}]} {
    %c0 = arith.constant 0 : index
    %c0_0 = arith.constant 0 : index
    %0 = vector.load %arg2[%c0, %c0_0] : memref<16x128xbf16, #tpu.memory_space<vmem>>, vector<16x128xbf16>
    %c0_1 = arith.constant 0 : index
    %c0_2 = arith.constant 0 : index
    %1 = vector.load %arg3[%c0_1, %c0_2] : memref<128x128xbf16, #tpu.memory_space<vmem>>, vector<128x128xbf16>
    %cst = arith.constant dense<0.000000e+00> : vector<16x128xf32>
    %2 = tpu.matmul %0, %1, %cst {dimension_numbers = #tpu.dot_dimension_numbers<[1], [0], [0], [1], [0, 0, 1, 1], [], []>} : vector<16x128xbf16>, vector<128x128xbf16>, vector<16x128xf32> -> vector<16x128xf32>
    %c0_3 = arith.constant 0 : index
    %c0_4 = arith.constant 0 : index
    %3 = vector.load %arg4[%c0_3, %c0_4] : memref<1x128xf32, #tpu.memory_space<vmem>>, vector<1x128xf32>
    %4 = vector.broadcast %3 : vector<1x128xf32> to vector<16x128xf32>
    %5 = arith.addf %2, %4 : vector<16x128xf32>
    %cst_5 = arith.constant 0.000000e+00 : f32
    %6 = vector.broadcast %cst_5 : f32 to vector<16x128xf32>
    %7 = arith.maximumf %5, %6 : vector<16x128xf32>
    %c0_6 = arith.constant 0 : index
    %c0_7 = arith.constant 0 : index
    %8 = vector.load %arg5[%c0_6, %c0_7] : memref<16x128xf32, #tpu.memory_space<vmem>>, vector<16x128xf32>
    tpu.vector_store %arg5[%c0_6, %c0_7], %7 {strides = array<i32>} : memref<16x128xf32, #tpu.memory_space<vmem>>, vector<16x128xf32>,
    return
  }
  func.func @transform_0(%arg0: i32, %arg1: i32) -> (i32, i32) {
    %c0_i32 = arith.constant 0 : i32
    %c0_i32_0 = arith.constant 0 : i32
    return %arg0, %c0_i32 : i32, i32
  }
  func.func @transform_1(%arg0: i32, %arg1: i32) -> (i32, i32) {
    %c0_i32 = arith.constant 0 : i32
    %c0_i32_0 = arith.constant 0 : i32
    return %c0_i32, %arg1 : i32, i32
  }
  func.func @transform_2(%arg0: i32, %arg1: i32) -> (i32, i32) {
    %c0_i32 = arith.constant 0 : i32
    %c0_i32_0 = arith.constant 0 : i32
    return %c0_i32, %arg1 : i32, i32
  }
  func.func @transform_3(%arg0: i32, %arg1: i32) -> (i32, i32) {
    %c0_i32 = arith.constant 0 : i32
    return %arg0, %arg1 : i32, i32
  }
}

</mosaic_0001>

<llo_original>
// kernel: _dense_forward_impl.1
$region0: #{_dense_forward_impl.1}
  #allocation0 [shape = 'u32[]', space=smem, size = 0x4, offset = 0x4, fixed_abs, tag = 'smem constant byte address 0x4 - core index']
  #allocation1 [shape = 'u32[144,128]{1,0:T(1,128)}', space=vmem, size = 0x12000, scoped, tag = 'internal scratch']
  %s0 = inlined_call_operand.vmem [shape: bf16[16,128], index: 0, kind: input, shape index: {}]
  %s1 = inlined_call_operand.hbm [shape: bf16[128,128], index: 1, kind: input, shape index: {}]
  %s2 = inlined_call_operand.vmem [shape: f32[1,128], index: 2, kind: input, shape index: {}]
  %s3 = inlined_call_operand.vmem [shape: f32[16,128], index: 3, kind: output, shape index: {}]
  %s4 = sld [smem:[#allocation0]]
  $region26: #{_dense_forward_impl.1} parent=0
    _
  %s6 = ssub.s32 1, %s4
  %s7 = scalar_select 0, %s6, %s4
  $region1: #{_dense_forward_impl.1} parent=0
    #allocation2 [shape = 'u8[32768]{0}', space=vmem, size = 0x8000, scoped, tag = 'input window, operand 1, single buffered']
    #allocation3 [shape = 's32[1]{0}', space=sflag, size = 0x4, scoped, tag = 'scoped memory for _dense_forward_impl.1']
    %8 = vsyncpa [#allocation3], 0
    // Predicated region
    $region2: #{_dense_forward_impl.1} parent=1 // pred_check
      _
    $region3: #{_dense_forward_impl.1} parent=1 // pred_check_branch
      %10 = sbr.rel (0) target = $region5
    $region4: #{_dense_forward_impl.1} parent=1 // pred_region
      _
    $region5: #{_dense_forward_impl.1} parent=1 // pred_fallthru
      _
    // Predicated region
    $region6: #{_dense_forward_impl.1} parent=1 // pred_check
      _
    $region7: #{_dense_forward_impl.1} parent=1 // pred_check_branch
      %12 = sbr.rel (0) target = $region9
    $region8: #{_dense_forward_impl.1} parent=1 // pred_region
      %s14 = ssub.s32 1024, 1024
      %15 = vsyncadd [#allocation3], %s14
      %s16 = sshll.u32 [#allocation2], 4
      %s17 = int_to_ptr.vmem [resolvable:$true] %s16
      %22 = dma.hbm_to_vmem [thread:$0]  %s1, 1024, %s17, [#allocation3], 64, 64, 4
    $region9: #{_dense_forward_impl.1} parent=1 // pred_fallthru
      _
    // Predicated region
    $region10: #{_dense_forward_impl.1} parent=1 // pred_check
      _
    $region11: #{_dense_forward_impl.1} parent=1 // pred_check_branch
      %24 = sbr.rel (0) target = $region13
    $region12: #{_dense_forward_impl.1} parent=1 // pred_region
      _
    $region13: #{_dense_forward_impl.1} parent=1 // pred_fallthru
      _
    // Predicated region
    $region14: #{_dense_forward_impl.1} parent=1 // pred_check
      _
    $region15: #{_dense_forward_impl.1} parent=1 // pred_check_branch
      %26 = sbr.rel (0) target = $region17
    $region16: #{_dense_forward_impl.1} parent=1 // pred_region
      %27 = dma.done [#allocation3], 1024
    $region17: #{_dense_forward_impl.1} parent=1 // pred_fallthru
      _
    %v29 = vld [vmem:[%s0] sm:$0xf]
    %v30 = vld [vmem:[%s0 + $0x4] sm:$0xf]
    %v31 = vld [vmem:[#allocation2] sm:$0xf]
    %v32 = vld [vmem:[#allocation2 + $0x4] sm:$0xf]
    %v33 = vld [vmem:[#allocation2 + $0x8] sm:$0xf]
    %v34 = vld [vmem:[#allocation2 + $0xc] sm:$0xf]
    %v35 = vld [vmem:[#allocation2 + $0x10] sm:$0xf]
    %v36 = vld [vmem:[#allocation2 + $0x14] sm:$0xf]
    %v37 = vld [vmem:[#allocation2 + $0x18] sm:$0xf]
    %v38 = vld [vmem:[#allocation2 + $0x1c] sm:$0xf]
    %v39 = vld [vmem:[#allocation2 + $0x20] sm:$0xf]
    %v40 = vld [vmem:[#allocation2 + $0x24] sm:$0xf]
    %v41 = vld [vmem:[#allocation2 + $0x28] sm:$0xf]
    %v42 = vld [vmem:[#allocation2 + $0x2c] sm:$0xf]
    %v43 = vld [vmem:[#allocation2 + $0x30] sm:$0xf]
    %v44 = vld [vmem:[#allocation2 + $0x34] sm:$0xf]
    %v45 = vld [vmem:[#allocation2 + $0x38] sm:$0xf]
    %v46 = vld [vmem:[#allocation2 + $0x3c] sm:$0xf]
    %v47 = vld [vmem:[%s2] sm:$0x1]
    %v49 = vlaneseq
    %v50 = vshrl.u32 %v49, 7
    %v51 = vsub.s32 0, %v50
    %v52 = vrot.slane %v47, %v51
    %v56 = vunpack.c.l.b16 %v29
    %v57 = vunpack.c.l.b16 %v30
    %v58 = vpack.c.b16 %v57, %v56
    %v76 = vunpack.c.l.b16 %v31
    %v77 = vunpack.c.l.b16 %v32
    %v78 = vunpack.c.l.b16 %v33
    %v79 = vunpack.c.l.b16 %v34
    %v80 = vunpack.c.l.b16 %v35
    %v81 = vunpack.c.l.b16 %v36
    %v82 = vunpack.c.l.b16 %v37
    %v83 = vunpack.c.l.b16 %v38
    %v84 = vunpack.c.l.b16 %v39
    %v85 = vunpack.c.l.b16 %v40
    %v86 = vunpack.c.l.b16 %v41
    %v87 = vunpack.c.l.b16 %v42
    %v88 = vunpack.c.l.b16 %v43
    %v89 = vunpack.c.l.b16 %v44
    %v90 = vunpack.c.l.b16 %v45
    %v91 = vunpack.c.l.b16 %v46
    %v92 = vpack.c.b16 %v77, %v76
    %v93 = vpack.c.b16 %v79, %v78
    %v94 = vpack.c.b16 %v81, %v80
    %v95 = vpack.c.b16 %v83, %v82
    %v96 = vpack.c.b16 %v85, %v84
    %v97 = vpack.c.b16 %v87, %v86
    %v98 = vpack.c.b16 %v89, %v88
    %v99 = vpack.c.b16 %v91, %v90
    %108 = vmatprep.subr.bf16.mxu0 0
    %109 = vmatpush1.bf16.msra.mxu0 %v92
    %110 = vmatprep.subr.bf16.mxu0 0
    %111 = vmatpush1.bf16.msra.mxu0 %v93
    %112 = vmatprep.subr.bf16.mxu0 0
    %113 = vmatpush1.bf16.msra.mxu0 %v94
    %114 = vmatprep.subr.bf16.mxu0 0
    %115 = vmatpush1.bf16.msra.mxu0 %v95
    %116 = vmatprep.subr.bf16.mxu0 0
    %117 = vmatpush1.bf16.msra.mxu0 %v96
    %118 = vmatprep.subr.bf16.mxu0 0
    %119 = vmatpush1.bf16.msra.mxu0 %v97
    %120 = vmatprep.subr.bf16.mxu0 0
    %121 = vmatpush1.bf16.msra.mxu0 %v98
    %122 = vmatprep.subr.bf16.mxu0 0
    %123 = vmatpush1.bf16.msra.mxu0 %v99
    %124 = vmatprep.subr.bf16.mxu0 0
    %125 = vmatpush1.bf16.msra.mxu0 0
    %126 = vmatprep.subr.bf16.mxu0 0
    %127 = vmatpush1.bf16.msra.mxu0 0
    %128 = vmatprep.subr.bf16.mxu0 0
    %129 = vmatpush1.bf16.msra.mxu0 0
    %130 = vmatprep.subr.bf16.mxu0 0
    %131 = vmatpush1.bf16.msra.mxu0 0
    %132 = vmatprep.subr.bf16.mxu0 0
    %133 = vmatpush1.bf16.msra.mxu0 0
    %134 = vmatprep.subr.bf16.mxu0 0
    %135 = vmatpush1.bf16.msra.mxu0 0
    %136 = vmatprep.subr.bf16.mxu0 0
    %137 = vmatpush1.bf16.msra.mxu0 0
    %138 = vmatprep.subr.bf16.mxu0 0
    %139 = vmatpush1.bf16.msra.mxu0 0
    %140 = vmatprep.mubr.bf16.mxu0 0
    %141 = vmatmul.mubr.bf16.gmra.mrb[0].mxu0 %v58
    %v142 = vpop.f32.mrb[0].mxu0
    %v143 = vadd.f32 %v52, %v142
    %v144 = vpop.f32.mrb[0].mxu0
    %v145 = vpop.f32.mrb[0].mxu0
    %v146 = vadd.f32 %v52, %v145
    %v147 = vpop.f32.mrb[0].mxu0
    %148 = vdwg.mxu0
    %v149 = vmax.f32 %v143, 0.0
    %v150 = vmax.f32 %v146, 0.0
    %151 = vst [vmem:[%s3] sm:$0xff] %v149
    %152 = vst [vmem:[%s3 + $0x8] sm:$0xff] %v150
    // Predicated region
    $region18: #{_dense_forward_impl.1} parent=1 // pred_check
      _
    $region19: #{_dense_forward_impl.1} parent=1 // pred_check_branch
      %154 = sbr.rel (0) target = $region21
    $region20: #{_dense_forward_impl.1} parent=1 // pred_region
      _
    $region21: #{_dense_forward_impl.1} parent=1 // pred_fallthru
      _
    // Predicated region
    $region22: #{_dense_forward_impl.1} parent=1 // pred_check
      _
    $region23: #{_dense_forward_impl.1} parent=1 // pred_check_branch
      %156 = sbr.rel (0) target = $region25
    $region24: #{_dense_forward_impl.1} parent=1 // pred_region
      _
    $region25: #{_dense_forward_impl.1} parent=1 // pred_fallthru
      _
    %157 = vsyncpa [#allocation3], 1

</llo_original>
